<compile_context>
chip_gen: v5e
topology: v5e:2x2
jax: 0.10.0
libtpu: 0.0.40
codegen_flags: <defaults>
</compile_context>

<pallas_src>
import functools

import jax
import jax.numpy as jnp
import numpy as np
from jax.experimental import pallas as pl
from jax.experimental.pallas import tpu as pltpu

CLIP_DEFAULT_MEAN = (0.48145466, 0.4578275, 0.40821073)
CLIP_DEFAULT_STD = (0.26862954, 0.26130258, 0.27577711)
CLIP_START_TOKEN = 49406
CLIP_END_TOKEN = 49407


# --------------------------------------------------------------------------
# Host-side: separable bicubic interpolation matrix (Keys kernel, a = -0.5).
# --------------------------------------------------------------------------
def _bicubic_matrix_np(in_size: int, out_size: int, a: float = -0.5):
    """[out_size, in_size] float64 matrix M such that resized = M @ signal."""
    scale = in_size / out_size
    i = np.arange(out_size, dtype=np.float64)
    src = (i + 0.5) * scale - 0.5
    base = np.floor(src).astype(np.int64)
    M = np.zeros((out_size, in_size), dtype=np.float64)
    rows = np.arange(out_size)
    for k in range(-1, 3):
        idx = np.clip(base + k, 0, in_size - 1)
        x = np.abs(src - (base + k))
        w1 = (a + 2.0) * x ** 3 - (a + 3.0) * x ** 2 + 1.0
        w2 = a * x ** 3 - 5.0 * a * x ** 2 + 8.0 * a * x - 4.0 * a
        w = np.where(x <= 1.0, w1, np.where(x < 2.0, w2, 0.0))
        np.add.at(M, (rows, idx), w)
    M /= M.sum(axis=1, keepdims=True)
    # TODO(synk): PIL/torchvision antialiased bicubic (widened support when
    # downscaling) is not reproduced here.
    return M


# --------------------------------------------------------------------------
# Best-effort per-generation tuning (VMEM budget / limit, TensorCore count).
# --------------------------------------------------------------------------
def _detect_tpu():
    """Returns (vmem_budget_bytes, vmem_limit_bytes, num_tensorcores).

    v5e/v6e: 128 MiB physical VMEM, 1 TensorCore -> large blocks, big limit.
    v7x:     64 MiB physical VMEM, 2 TensorCores -> smaller budget, grid >= 2.
    Conservative (v7x-safe) fallback when the query is unavailable
    (e.g. interpret mode on CPU).
    """
    budget, limit, cores = 24 << 20, 48 << 20, 1
    kind = ""
    try:
        kind = jax.devices()[0].device_kind.lower()
    except Exception:
        pass
    cap = 0
    try:
        cap = int(getattr(pltpu.get_tpu_info(), "vmem_capacity_bytes", 0))
    except Exception:
        pass
    if cap >= (100 << 20) or "v5" in kind or "v6" in kind:
        budget, limit = 64 << 20, 100 << 20
    if "v7" in kind or (0 < cap <= (80 << 20)):
        cores = 2
    return budget, limit, cores


def _pick_batch_block(B, C, H, W, S, in_bytes, out_bytes, cbytes, budget, cores):
    """Largest batch block whose double-buffered I/O plus live in-kernel
    temporaries fit the VMEM budget. Nb need not divide B (Pallas clips the
    ragged last grid step). On 2-TensorCore parts keep at least `cores` grid
    steps so both cores stay busy; on 1-TC parts just take the max."""
    io = 2 * C * (H * W * in_bytes + S * S * out_bytes)             # dbl-buffered
    tmp = C * (H * W * (4 + cbytes) + H * S * (4 + cbytes) + 2 * S * S * 4)
    per_image = io + tmp
    nb = int(max(1, min(B, 32, budget // per_image)))               # 32: unroll cap
    if cores > 1 and B > 1:
        nb = min(nb, max(1, -(-B // cores)))
    return nb


# --------------------------------------------------------------------------
# Pallas kernel: image resize (flat + per-plane matmuls) + fused normalize.
# --------------------------------------------------------------------------
def _image_kernel(img_ref, mh_ref, mwt_ref, out_ref, *, bias, compute_dtype):
    nb, c, h, w = img_ref.shape
    # Cast (uint8 or float) pixels to the matmul compute dtype.
    x = img_ref[...]
    if jnp.issubdtype(x.dtype, jnp.integer):
        x = x.astype(jnp.float32)
    x = x.astype(compute_dtype).reshape(nb * c * h, w)

    # Column resize (W -> S): ONE flat 2-D MXU matmul over every plane in the
    # block, with mwt the stationary RHS. No broadcast copies of the matrix.
    t1 = jnp.dot(x, mwt_ref[...], preferred_element_type=jnp.float32)
    t1 = t1.astype(compute_dtype)                                  # (nb*c*h, S)

    # Row resize (H -> S) per plane as plain 2-D matmuls. The per-channel
    # normalization scale (and ToTensor's /255) is pre-folded into mh_ref[ci]
    # on the host; only a Python-scalar bias add remains (no array constants
    # captured by the kernel).
    for b in range(nb):
        for ci in range(c):
            p = b * c + ci
            t1p = t1[p * h:(p + 1) * h, :]                         # (h, S)
            res = jnp.dot(mh_ref[ci], t1p,
                          preferred_element_type=jnp.float32)      # (S, S)
            out_ref[b, ci] = (res + bias[ci]).astype(out_ref.dtype)


def clip_image_transform(images, image_size,
                         image_mean=CLIP_DEFAULT_MEAN,
                         image_std=CLIP_DEFAULT_STD,
                         compute_dtype=jnp.bfloat16,
                         out_dtype=jnp.float32):
    """images: [B, 3, H, W] NCHW, uint8 raw pixels or float in [0, 1].
    Returns [B, 3, S, S] normalized images with dtype `out_dtype`.

    compute_dtype: dtype of the MXU resize-matmul operands (f32 accumulation).
      bf16 (default) keeps v5e/v7x on the memory roofline; pass jnp.float32
      for bit-tight numerics (expect ~1e-3-level deviations with bf16)."""
    B, C, H, W = images.shape
    assert C == 3, "CLIP image transform expects RGB images"
    # Resize(shorter side -> image_size) then CenterCrop(image_size): for
    # square inputs the resize target is exactly (S, S) and the crop is an
    # identity. TODO(synk): non-square shorter-side resize + center crop.
    assert H == W, "restricted to square inputs (center crop becomes identity)"
    S = int(image_size)

    if images.dtype == jnp.uint8:
        in_scale = 1.0 / 255.0      # ToTensor's /255, folded into the matrices
    else:
        if images.dtype != jnp.float32:
            images = images.astype(jnp.float32)
        in_scale = 1.0              # float inputs assumed already in [0, 1]

    # Fold per-channel scale into per-channel copies of the row-resize matrix
    # (rows of the resize matrices sum to 1, so scale/bias commute with the
    # resize); bias stays as a Python-float scalar add inside the kernel.
    mh64 = _bicubic_matrix_np(H, S)                                 # (S, H)
    mw64 = _bicubic_matrix_np(W, S)                                 # (S, W)
    scale = [in_scale / sd for sd in image_std]
    bias = tuple(float(-m / sd) for m, sd in zip(image_mean, image_std))
    mh = jnp.asarray(np.stack([mh64 * sc for sc in scale]), compute_dtype)
    mwt = jnp.asarray(mw64.T, compute_dtype)                        # (W, S)

    in_bytes = images.dtype.itemsize
    out_bytes = np.dtype(out_dtype).itemsize
    cbytes = np.dtype(compute_dtype).itemsize
    budget, vmem_limit, cores = _detect_tpu()
    Nb = _pick_batch_block(B, C, H, W, S, in_bytes, out_bytes, cbytes,
                           budget, cores)
    grid = (pl.cdiv(B, Nb),)

    flops = 2 * B * C * (H * W * S + H * S * S)
    bytes_accessed = (B * C * (H * W * in_bytes + S * S * out_bytes)
                      + (C * S * H + W * S) * cbytes)

    kernel = functools.partial(_image_kernel, bias=bias,
                               compute_dtype=compute_dtype)
    return pl.pallas_call(
        kernel,
        out_shape=jax.ShapeDtypeStruct((B, C, S, S), out_dtype),
        grid=grid,
        in_specs=[
            pl.BlockSpec((Nb, C, H, W), lambda i: (i, 0, 0, 0)),
            # Constant-index blocks: resident after the first grid step.
            pl.BlockSpec((C, S, H), lambda i: (0, 0, 0)),
            pl.BlockSpec((W, S), lambda i: (0, 0)),
        ],
        out_specs=pl.BlockSpec((Nb, C, S, S), lambda i: (i, 0, 0, 0)),
        compiler_params=pltpu.CompilerParams(
            dimension_semantics=("parallel",),
            vmem_limit_bytes=vmem_limit),
        cost_estimate=pl.CostEstimate(
            flops=flops, transcendentals=0, bytes_accessed=bytes_accessed),
    )(images, mh, mwt)


# --------------------------------------------------------------------------
# Pallas kernel: text truncate + add bos/eos + pad, vectorized over rows.
# --------------------------------------------------------------------------
def _text_kernel(shifted_ref, lens_ref, out_ref, *, max_len, start_token,
                 end_token):
    # Truncate(max_len-2) -> AddToken(start, begin) -> AddToken(end) -> Pad.
    n = jnp.minimum(lens_ref[...], max_len - 2)                   # (TB, 1)
    idx = jax.lax.broadcasted_iota(jnp.int32, shifted_ref.shape, 1)
    toks = shifted_ref[...]                                       # pre-shifted by 1
    out = jnp.where(idx == 0, start_token,                        # BOS
          jnp.where(idx <= n, toks,                               # payload
          jnp.where(idx == n + 1, end_token, 0)))                 # EOS + pad(0)
    out_ref[...] = out.astype(jnp.int32)


def clip_text_transform(token_ids, lengths, text_max_length,
                        start_token=CLIP_START_TOKEN,
                        end_token=CLIP_END_TOKEN,
                        max_row_block=1024):
    """token_ids: [B, text_max_length] int32 raw BPE ids (zero padded),
    lengths: [B] int32 true lengths. Returns [B, text_max_length] int32.
    TODO(synk): the CLIP BPE tokenizer itself (string -> ids) has no Pallas
    equivalent; torch emits int64 ids, TPU kernels use int32."""
    B, L = token_ids.shape
    assert L == text_max_length
    # Lane-dense layout: pad the token dim to a multiple of 128 and pre-shift
    # the ids right by one column (room for BOS) so the kernel is a pure
    # lane-select with no cross-lane rotate.
    Lpad = ((L + 1 + 127) // 128) * 128
    toks = jnp.pad(token_ids.astype(jnp.int32), ((0, 0), (1, Lpad - 1 - L)))
    lens = lengths.astype(jnp.int32).reshape(B, 1)

    # One grid step covers the whole batch for typical sizes; grid-step
    # overhead is the only cost that matters in this tiny kernel.
    TB = B if B <= max_row_block else max_row_block
    grid = (pl.cdiv(B, TB),)
    kernel = functools.partial(_text_kernel, max_len=L,
                               start_token=start_token, end_token=end_token)
    out = pl.pallas_call(
        kernel,
        out_shape=jax.ShapeDtypeStruct((B, Lpad), jnp.int32),
        grid=grid,
        in_specs=[
            pl.BlockSpec((TB, Lpad), lambda i: (i, 0)),
            pl.BlockSpec((TB, 1), lambda i: (i, 0)),
        ],
        out_specs=pl.BlockSpec((TB, Lpad), lambda i: (i, 0)),
        compiler_params=pltpu.CompilerParams(
            dimension_semantics=("parallel",)),
    )(toks, lens)
    return out[:, :L]


# --------------------------------------------------------------------------
# CLIPTransform wrapper (forward returns (image_tensor, text_tensor)).
# --------------------------------------------------------------------------
def clip_transform(images, token_ids, lengths, *, image_size, text_max_length,
                   image_out_dtype=jnp.float32,
                   image_compute_dtype=jnp.bfloat16):
    img_out = clip_image_transform(images, image_size,
                                   compute_dtype=image_compute_dtype,
                                   out_dtype=image_out_dtype)
    txt_out = clip_text_transform(token_ids, lengths, text_max_length)
    return img_out, txt_out


if __name__ == "__main__":
    key = jax.random.PRNGKey(0)
    k_img, k_txt = jax.random.split(key)

    # Small shapes: batch=2, RGB, 16x16 images, image_size=16, text length 16.
    B, C, H, W = 2, 3, 16, 16
    IMAGE_SIZE = 16
    TEXT_LEN = 16

    # Raw decoded RGB pixels, uint8 NCHW (ToTensor's /255 happens in-kernel).
    images = jax.random.randint(k_img, (B, C, H, W), 0, 256,
                                dtype=jnp.int32).astype(jnp.uint8)

    # Simulated BPE tokenizer output: raw token ids + true lengths.
    token_ids = jax.random.randint(k_txt, (B, TEXT_LEN), 1, 1000,
                                   dtype=jnp.int32)
    lengths = jnp.asarray([5, 20], dtype=jnp.int32)  # second gets truncated

    # Default (bf16 matmul operands) path.
    img_out, txt_out = clip_transform(
        images, token_ids, lengths,
        image_size=IMAGE_SIZE, text_max_length=TEXT_LEN)
    img_out = jax.block_until_ready(img_out)
    txt_out = jax.block_until_ready(txt_out)

    # f32-compute path for a tight numerical check.
    img_out_f32 = jax.block_until_ready(
        clip_image_transform(images, IMAGE_SIZE, compute_dtype=jnp.float32))

    # ---- reference checks (pure numpy) --------------------------------------
    # Identity resize (H == W == IMAGE_SIZE): reference = (x/255 - mean) / std.
    mean = np.asarray(CLIP_DEFAULT_MEAN, np.float32).reshape(1, 3, 1, 1)
    std = np.asarray(CLIP_DEFAULT_STD, np.float32).reshape(1, 3, 1, 1)
    ref_img = (np.asarray(images).astype(np.float32) / 255.0 - mean) / std
    np.testing.assert_allclose(np.asarray(img_out_f32), ref_img,
                               atol=1e-4, rtol=1e-4)
    np.testing.assert_allclose(np.asarray(img_out), ref_img,
                               atol=2e-2, rtol=2e-2)   # bf16 matmul operands

    ref_txt = np.zeros((B, TEXT_LEN), np.int32)
    for b in range(B):
        n = min(int(lengths[b]), TEXT_LEN - 2)
        ref_txt[b, 0] = CLIP_START_TOKEN
        ref_txt[b, 1:1 + n] = np.asarray(token_ids)[b, :n]
        ref_txt[b, 1 + n] = CLIP_END_TOKEN
    np.testing.assert_array_equal(np.asarray(txt_out), ref_txt)

    print("KERNEL_OK")
</pallas_src>

<mosaic_0001>
module attributes {stable_mosaic.version = 11 : i64} {
  func.func @_image_kernel(%arg0: i32, %arg1: memref<2x3x16x16xi8, #tpu.memory_space<vmem>>, %arg2: memref<3x16x16xbf16, #tpu.memory_space<vmem>>, %arg3: memref<16x16xbf16, #tpu.memory_space<vmem>>, %arg4: memref<2x3x16x16xf32, #tpu.memory_space<vmem>>) attributes {dimension_semantics = [#tpu.dimension_semantics<parallel>], iteration_bounds = array<i64: 1>, scalar_prefetch = 0 : i64, scratch_operands = 0 : i64, tpu.core_type = #tpu.core_type<tc>, window_params = [{transform_indices = @transform_0, window_bounds = array<i64: 2, 3, 16, 16>}, {pipeline_mode = #tpu.pipeline_mode<synchronous>, transform_indices = @transform_1, window_bounds = array<i64: 3, 16, 16>}, {pipeline_mode = #tpu.pipeline_mode<synchronous>, transform_indices = @transform_2, window_bounds = array<i64: 16, 16>}, {transform_indices = @transform_3, window_bounds = array<i64: 2, 3, 16, 16>}]} {
    %c0 = arith.constant 0 : index
    %c0_0 = arith.constant 0 : index
    %c0_1 = arith.constant 0 : index
    %c0_2 = arith.constant 0 : index
    %0 = vector.load %arg1[%c0, %c0_0, %c0_1, %c0_2] : memref<2x3x16x16xi8, #tpu.memory_space<vmem>>, vector<2x3x16x16xi8>
    %1 = arith.uitofp %0 : vector<2x3x16x16xi8> to vector<2x3x16x16xf32>
    %2 = arith.truncf %1 : vector<2x3x16x16xf32> to vector<2x3x16x16xbf16>
    %3 = vector.shape_cast %2 : vector<2x3x16x16xbf16> to vector<96x16xbf16>
    %c0_3 = arith.constant 0 : index
    %c0_4 = arith.constant 0 : index
    %4 = vector.load %arg3[%c0_3, %c0_4] : memref<16x16xbf16, #tpu.memory_space<vmem>>, vector<16x16xbf16>
    %cst = arith.constant dense<0.000000e+00> : vector<96x16xf32>
    %5 = tpu.matmul %3, %4, %cst {dimension_numbers = #tpu.dot_dimension_numbers<[1], [0], [0], [1], [0, 0, 1, 1], [], []>} : vector<96x16xbf16>, vector<16x16xbf16>, vector<96x16xf32> -> vector<96x16xf32>
    %6 = arith.truncf %5 : vector<96x16xf32> to vector<96x16xbf16>
    %7 = vector.extract_strided_slice %6 {offsets = [0, 0], sizes = [16, 16], strides = [1, 1]} : vector<96x16xbf16> to vector<16x16xbf16>
    %c0_5 = arith.constant 0 : index
    %c0_6 = arith.constant 0 : index
    %c0_7 = arith.constant 0 : index
    %8 = vector.load %arg2[%c0_5, %c0_6, %c0_7] : memref<3x16x16xbf16, #tpu.memory_space<vmem>>, vector<1x16x16xbf16>
    %9 = vector.shape_cast %8 : vector<1x16x16xbf16> to vector<16x16xbf16>
    %cst_8 = arith.constant dense<0.000000e+00> : vector<16x16xf32>
    %10 = tpu.matmul %9, %7, %cst_8 {dimension_numbers = #tpu.dot_dimension_numbers<[1], [0], [0], [1], [0, 0, 1, 1], [], []>} : vector<16x16xbf16>, vector<16x16xbf16>, vector<16x16xf32> -> vector<16x16xf32>
    %cst_9 = arith.constant -1.79226255 : f32
    %11 = vector.broadcast %cst_9 : f32 to vector<16x16xf32>
    %12 = arith.addf %10, %11 : vector<16x16xf32>
    %c0_10 = arith.constant 0 : index
    %c0_11 = arith.constant 0 : index
    %c0_12 = arith.constant 0 : index
    %c0_13 = arith.constant 0 : index
    %13 = vector.load %arg4[%c0_10, %c0_11, %c0_12, %c0_13] : memref<2x3x16x16xf32, #tpu.memory_space<vmem>>, vector<1x1x16x16xf32>
    %14 = vector.shape_cast %13 : vector<1x1x16x16xf32> to vector<16x16xf32>
    %15 = vector.shape_cast %12 : vector<16x16xf32> to vector<1x1x16x16xf32>
    tpu.vector_store %arg4[%c0_10, %c0_11, %c0_12, %c0_13], %15 {strides = array<i32>} : memref<2x3x16x16xf32, #tpu.memory_space<vmem>>, vector<1x1x16x16xf32>,
    %16 = vector.extract_strided_slice %6 {offsets = [16, 0], sizes = [16, 16], strides = [1, 1]} : vector<96x16xbf16> to vector<16x16xbf16>
    %c1 = arith.constant 1 : index
    %c0_14 = arith.constant 0 : index
    %c0_15 = arith.constant 0 : index
    %17 = vector.load %arg2[%c1, %c0_14, %c0_15] : memref<3x16x16xbf16, #tpu.memory_space<vmem>>, vector<1x16x16xbf16>
    %18 = vector.shape_cast %17 : vector<1x16x16xbf16> to vector<16x16xbf16>
    %cst_16 = arith.constant dense<0.000000e+00> : vector<16x16xf32>
    %19 = tpu.matmul %18, %16, %cst_16 {dimension_numbers = #tpu.dot_dimension_numbers<[1], [0], [0], [1], [0, 0, 1, 1], [], []>} : vector<16x16xbf16>, vector<16x16xbf16>, vector<16x16xf32> -> vector<16x16xf32>
    %cst_17 = arith.constant -1.75209713 : f32
    %20 = vector.broadcast %cst_17 : f32 to vector<16x16xf32>
    %21 = arith.addf %19, %20 : vector<16x16xf32>
    %c0_18 = arith.constant 0 : index
    %c1_19 = arith.constant 1 : index
    %c0_20 = arith.constant 0 : index
    %c0_21 = arith.constant 0 : index
    %22 = vector.load %arg4[%c0_18, %c1_19, %c0_20, %c0_21] : memref<2x3x16x16xf32, #tpu.memory_space<vmem>>, vector<1x1x16x16xf32>
    %23 = vector.shape_cast %22 : vector<1x1x16x16xf32> to vector<16x16xf32>
    %24 = vector.shape_cast %21 : vector<16x16xf32> to vector<1x1x16x16xf32>
    tpu.vector_store %arg4[%c0_18, %c1_19, %c0_20, %c0_21], %24 {strides = array<i32>} : memref<2x3x16x16xf32, #tpu.memory_space<vmem>>, vector<1x1x16x16xf32>,
    %25 = vector.extract_strided_slice %6 {offsets = [32, 0], sizes = [16, 16], strides = [1, 1]} : vector<96x16xbf16> to vector<16x16xbf16>
    %c2 = arith.constant 2 : index
    %c0_22 = arith.constant 0 : index
    %c0_23 = arith.constant 0 : index
    %26 = vector.load %arg2[%c2, %c0_22, %c0_23] : memref<3x16x16xbf16, #tpu.memory_space<vmem>>, vector<1x16x16xbf16>
    %27 = vector.shape_cast %26 : vector<1x16x16xbf16> to vector<16x16xbf16>
    %cst_24 = arith.constant dense<0.000000e+00> : vector<16x16xf32>
    %28 = tpu.matmul %27, %25, %cst_24 {dimension_numbers = #tpu.dot_dimension_numbers<[1], [0], [0], [1], [0, 0, 1, 1], [], []>} : vector<16x16xbf16>, vector<16x16xbf16>, vector<16x16xf32> -> vector<16x16xf32>
    %cst_25 = arith.constant -1.48021972 : f32
    %29 = vector.broadcast %cst_25 : f32 to vector<16x16xf32>
    %30 = arith.addf %28, %29 : vector<16x16xf32>
    %c0_26 = arith.constant 0 : index
    %c2_27 = arith.constant 2 : index
    %c0_28 = arith.constant 0 : index
    %c0_29 = arith.constant 0 : index
    %31 = vector.load %arg4[%c0_26, %c2_27, %c0_28, %c0_29] : memref<2x3x16x16xf32, #tpu.memory_space<vmem>>, vector<1x1x16x16xf32>
    %32 = vector.shape_cast %31 : vector<1x1x16x16xf32> to vector<16x16xf32>
    %33 = vector.shape_cast %30 : vector<16x16xf32> to vector<1x1x16x16xf32>
    tpu.vector_store %arg4[%c0_26, %c2_27, %c0_28, %c0_29], %33 {strides = array<i32>} : memref<2x3x16x16xf32, #tpu.memory_space<vmem>>, vector<1x1x16x16xf32>,
    %34 = vector.extract_strided_slice %6 {offsets = [48, 0], sizes = [16, 16], strides = [1, 1]} : vector<96x16xbf16> to vector<16x16xbf16>
    %c0_30 = arith.constant 0 : index
    %c0_31 = arith.constant 0 : index
    %c0_32 = arith.constant 0 : index
    %35 = vector.load %arg2[%c0_30, %c0_31, %c0_32] : memref<3x16x16xbf16, #tpu.memory_space<vmem>>, vector<1x16x16xbf16>
    %36 = vector.shape_cast %35 : vector<1x16x16xbf16> to vector<16x16xbf16>
    %cst_33 = arith.constant dense<0.000000e+00> : vector<16x16xf32>
    %37 = tpu.matmul %36, %34, %cst_33 {dimension_numbers = #tpu.dot_dimension_numbers<[1], [0], [0], [1], [0, 0, 1, 1], [], []>} : vector<16x16xbf16>, vector<16x16xbf16>, vector<16x16xf32> -> vector<16x16xf32>
    %cst_34 = arith.constant -1.79226255 : f32
    %38 = vector.broadcast %cst_34 : f32 to vector<16x16xf32>
    %39 = arith.addf %37, %38 : vector<16x16xf32>
    %c1_35 = arith.constant 1 : index
    %c0_36 = arith.constant 0 : index
    %c0_37 = arith.constant 0 : index
    %c0_38 = arith.constant 0 : index
    %40 = vector.load %arg4[%c1_35, %c0_36, %c0_37, %c0_38] : memref<2x3x16x16xf32, #tpu.memory_space<vmem>>, vector<1x1x16x16xf32>
    %41 = vector.shape_cast %40 : vector<1x1x16x16xf32> to vector<16x16xf32>
    %42 = vector.shape_cast %39 : vector<16x16xf32> to vector<1x1x16x16xf32>
    tpu.vector_store %arg4[%c1_35, %c0_36, %c0_37, %c0_38], %42 {strides = array<i32>} : memref<2x3x16x16xf32, #tpu.memory_space<vmem>>, vector<1x1x16x16xf32>,
    %43 = vector.extract_strided_slice %6 {offsets = [64, 0], sizes = [16, 16], strides = [1, 1]} : vector<96x16xbf16> to vector<16x16xbf16>
    %c1_39 = arith.constant 1 : index
    %c0_40 = arith.constant 0 : index
    %c0_41 = arith.constant 0 : index
    %44 = vector.load %arg2[%c1_39, %c0_40, %c0_41] : memref<3x16x16xbf16, #tpu.memory_space<vmem>>, vector<1x16x16xbf16>
    %45 = vector.shape_cast %44 : vector<1x16x16xbf16> to vector<16x16xbf16>
    %cst_42 = arith.constant dense<0.000000e+00> : vector<16x16xf32>
    %46 = tpu.matmul %45, %43, %cst_42 {dimension_numbers = #tpu.dot_dimension_numbers<[1], [0], [0], [1], [0, 0, 1, 1], [], []>} : vector<16x16xbf16>, vector<16x16xbf16>, vector<16x16xf32> -> vector<16x16xf32>
    %cst_43 = arith.constant -1.75209713 : f32
    %47 = vector.broadcast %cst_43 : f32 to vector<16x16xf32>
    %48 = arith.addf %46, %47 : vector<16x16xf32>
    %c1_44 = arith.constant 1 : index
    %c1_45 = arith.constant 1 : index
    %c0_46 = arith.constant 0 : index
    %c0_47 = arith.constant 0 : index
    %49 = vector.load %arg4[%c1_44, %c1_45, %c0_46, %c0_47] : memref<2x3x16x16xf32, #tpu.memory_space<vmem>>, vector<1x1x16x16xf32>
    %50 = vector.shape_cast %49 : vector<1x1x16x16xf32> to vector<16x16xf32>
    %51 = vector.shape_cast %48 : vector<16x16xf32> to vector<1x1x16x16xf32>
    tpu.vector_store %arg4[%c1_44, %c1_45, %c0_46, %c0_47], %51 {strides = array<i32>} : memref<2x3x16x16xf32, #tpu.memory_space<vmem>>, vector<1x1x16x16xf32>,
    %52 = vector.extract_strided_slice %6 {offsets = [80, 0], sizes = [16, 16], strides = [1, 1]} : vector<96x16xbf16> to vector<16x16xbf16>
    %c2_48 = arith.constant 2 : index
    %c0_49 = arith.constant 0 : index
    %c0_50 = arith.constant 0 : index
    %53 = vector.load %arg2[%c2_48, %c0_49, %c0_50] : memref<3x16x16xbf16, #tpu.memory_space<vmem>>, vector<1x16x16xbf16>
    %54 = vector.shape_cast %53 : vector<1x16x16xbf16> to vector<16x16xbf16>
    %cst_51 = arith.constant dense<0.000000e+00> : vector<16x16xf32>
    %55 = tpu.matmul %54, %52, %cst_51 {dimension_numbers = #tpu.dot_dimension_numbers<[1], [0], [0], [1], [0, 0, 1, 1], [], []>} : vector<16x16xbf16>, vector<16x16xbf16>, vector<16x16xf32> -> vector<16x16xf32>
    %cst_52 = arith.constant -1.48021972 : f32
    %56 = vector.broadcast %cst_52 : f32 to vector<16x16xf32>
    %57 = arith.addf %55, %56 : vector<16x16xf32>
    %c1_53 = arith.constant 1 : index
    %c2_54 = arith.constant 2 : index
    %c0_55 = arith.constant 0 : index
    %c0_56 = arith.constant 0 : index
    %58 = vector.load %arg4[%c1_53, %c2_54, %c0_55, %c0_56] : memref<2x3x16x16xf32, #tpu.memory_space<vmem>>, vector<1x1x16x16xf32>
    %59 = vector.shape_cast %58 : vector<1x1x16x16xf32> to vector<16x16xf32>
    %60 = vector.shape_cast %57 : vector<16x16xf32> to vector<1x1x16x16xf32>
    tpu.vector_store %arg4[%c1_53, %c2_54, %c0_55, %c0_56], %60 {strides = array<i32>} : memref<2x3x16x16xf32, #tpu.memory_space<vmem>>, vector<1x1x16x16xf32>,
    return
  }
  func.func @transform_0(%arg0: i32) -> (i32, i32, i32, i32) {
    %c0_i32 = arith.constant 0 : i32
    %c0_i32_0 = arith.constant 0 : i32
    %c0_i32_1 = arith.constant 0 : i32
    %c0_i32_2 = arith.constant 0 : i32
    return %arg0, %c0_i32, %c0_i32_0, %c0_i32_1 : i32, i32, i32, i32
  }
  func.func @transform_1(%arg0: i32) -> (i32, i32, i32) {
    %c0_i32 = arith.constant 0 : i32
    %c0_i32_0 = arith.constant 0 : i32
    %c0_i32_1 = arith.constant 0 : i32
    %c0_i32_2 = arith.constant 0 : i32
    return %c0_i32, %c0_i32_0, %c0_i32_1 : i32, i32, i32
  }
  func.func @transform_2(%arg0: i32) -> (i32, i32) {
    %c0_i32 = arith.constant 0 : i32
    %c0_i32_0 = arith.constant 0 : i32
    %c0_i32_1 = arith.constant 0 : i32
    return %c0_i32, %c0_i32_0 : i32, i32
  }
  func.func @transform_3(%arg0: i32) -> (i32, i32, i32, i32) {
    %c0_i32 = arith.constant 0 : i32
    %c0_i32_0 = arith.constant 0 : i32
    %c0_i32_1 = arith.constant 0 : i32
    %c0_i32_2 = arith.constant 0 : i32
    return %arg0, %c0_i32, %c0_i32_0, %c0_i32_1 : i32, i32, i32, i32
  }
}

</mosaic_0001>

<llo_original>
// kernel: tpu_custom_call.1
$region0: #{tpu_custom_call.1}
  #allocation0 [shape = 'u32[]', space=smem, size = 0x4, offset = 0x4, fixed_abs, tag = 'smem constant byte address 0x4 - core index']
  #allocation1 [shape = 'u32[72,128]{1,0:T(1,128)}', space=vmem, size = 0x9000, scoped, tag = 'internal scratch']
  %s0 = inlined_call_operand.hbm [shape: u8[2,3,16,16], index: 0, kind: input, shape index: {}]
  %s1 = inlined_call_operand.hbm [shape: bf16[3,16,16], index: 1, kind: input, shape index: {}]
  %s2 = inlined_call_operand.hbm [shape: bf16[16,16], index: 2, kind: input, shape index: {}]
  %s3 = inlined_call_operand.hbm [shape: f32[2,3,16,16], index: 3, kind: output, shape index: {}]
  %s4 = sld [smem:[#allocation0]]
  $region34: #{tpu_custom_call.1} parent=0
    _
  %s6 = ssub.s32 1, %s4
  %s7 = scalar_select 0, %s6, %s4
  $region1: #{tpu_custom_call.1} parent=0
    #allocation2 [shape = 'u8[12288]{0}', space=vmem, size = 0x3000, scoped, tag = 'input window, operand 0, single buffered']
    #allocation3 [shape = 's32[1]{0}', space=sflag, size = 0x4, scoped, tag = 'scoped memory for tpu_custom_call.1']
    #allocation4 [shape = 's32[1]{0}', space=sflag, size = 0x4, scoped, tag = 'scoped memory for tpu_custom_call.1']
    #allocation5 [shape = 'u8[12288]{0}', space=vmem, size = 0x3000, scoped, tag = 'input window, operand 1, single buffered']
    #allocation6 [shape = 's32[1]{0}', space=sflag, size = 0x4, scoped, tag = 'scoped memory for tpu_custom_call.1']
    #allocation7 [shape = 'u8[4096]{0}', space=vmem, size = 0x1000, scoped, tag = 'input window, operand 2, single buffered']
    #allocation8 [shape = 'u8[49152]{0}', space=vmem, size = 0xc000, scoped, tag = 'output window, operand 0, single buffered']
    %8 = vsyncpa [#allocation3], 0
    %9 = vsyncpa [#allocation6], 0
    %10 = vsyncpa [#allocation4], 0
    // Predicated region
    $region2: #{tpu_custom_call.1} parent=1 // pred_check
      _
    $region3: #{tpu_custom_call.1} parent=1 // pred_check_branch
      %12 = sbr.rel (0) target = $region5
    $region4: #{tpu_custom_call.1} parent=1 // pred_region
      %14 = vsyncadd [#allocation3], 0
      %s15 = sshll.u32 %s0, 4
      %s16 = int_to_ptr.hbm [resolvable:$true] %s15
      %s17 = sshll.u32 [#allocation2], 4
      %s18 = int_to_ptr.vmem [resolvable:$true] %s17
      %23 = dma.hbm_to_vmem [thread:$0]  %s16, 384, %s18, [#allocation3], 32, 32, 2
    $region5: #{tpu_custom_call.1} parent=1 // pred_fallthru
      _
    // Predicated region
    $region6: #{tpu_custom_call.1} parent=1 // pred_check
      _
    $region7: #{tpu_custom_call.1} parent=1 // pred_check_branch
      %25 = sbr.rel (0) target = $region9
    $region8: #{tpu_custom_call.1} parent=1 // pred_region
      %27 = vsyncadd [#allocation6], 0
      %s28 = sshll.u32 %s1, 4
      %s29 = int_to_ptr.hbm [resolvable:$true] %s28
      %s30 = sshll.u32 [#allocation5], 4
      %s31 = int_to_ptr.vmem [resolvable:$true] %s30
      %36 = dma.hbm_to_vmem [thread:$0]  %s29, 384, %s31, [#allocation6], 64, 64, 4
    $region9: #{tpu_custom_call.1} parent=1 // pred_fallthru
      _
    // Predicated region
    $region10: #{tpu_custom_call.1} parent=1 // pred_check
      _
    $region11: #{tpu_custom_call.1} parent=1 // pred_check_branch
      %38 = sbr.rel (0) target = $region13
    $region12: #{tpu_custom_call.1} parent=1 // pred_region
      %40 = vsyncadd [#allocation6], 0
      %s41 = sshll.u32 %s2, 4
      %s42 = int_to_ptr.hbm [resolvable:$true] %s41
      %s43 = sshll.u32 [#allocation7], 4
      %s44 = int_to_ptr.vmem [resolvable:$true] %s43
      %49 = dma.hbm_to_vmem [thread:$0]  %s42, 128, %s44, [#allocation6], 64, 64, 4
    $region13: #{tpu_custom_call.1} parent=1 // pred_fallthru
      _
    // Predicated region
    $region14: #{tpu_custom_call.1} parent=1 // pred_check
      _
    $region15: #{tpu_custom_call.1} parent=1 // pred_check_branch
      %51 = sbr.rel (0) target = $region17
    $region16: #{tpu_custom_call.1} parent=1 // pred_region
      %53 = dma.done [#allocation3], 384
    $region17: #{tpu_custom_call.1} parent=1 // pred_fallthru
      _
    // Predicated region
    $region18: #{tpu_custom_call.1} parent=1 // pred_check
      _
    $region19: #{tpu_custom_call.1} parent=1 // pred_check_branch
      %55 = sbr.rel (0) target = $region21
    $region20: #{tpu_custom_call.1} parent=1 // pred_region
      %57 = dma.done [#allocation6], 384
    $region21: #{tpu_custom_call.1} parent=1 // pred_fallthru
      _
    // Predicated region
    $region22: #{tpu_custom_call.1} parent=1 // pred_check
      _
    $region23: #{tpu_custom_call.1} parent=1 // pred_check_branch
      %59 = sbr.rel (0) target = $region25
    $region24: #{tpu_custom_call.1} parent=1 // pred_region
      %61 = dma.done [#allocation6], 128
    $region25: #{tpu_custom_call.1} parent=1 // pred_fallthru
      _
    %v63 = vld [vmem:[#allocation2] sm:$0x3]
    %v64 = vld [vmem:[#allocation2 + $0x2] sm:$0x3]
    %v65 = vld [vmem:[#allocation2 + $0x4] sm:$0x3]
    %v66 = vld [vmem:[#allocation2 + $0x6] sm:$0x3]
    %v67 = vld [vmem:[#allocation2 + $0x8] sm:$0x3]
    %v68 = vld [vmem:[#allocation2 + $0xa] sm:$0x3]
    %v69 = vld [vmem:[#allocation2 + $0xc] sm:$0x3]
    %v70 = vld [vmem:[#allocation2 + $0xe] sm:$0x3]
    %v71 = vld [vmem:[#allocation2 + $0x10] sm:$0x3]
    %v72 = vld [vmem:[#allocation2 + $0x12] sm:$0x3]
    %v73 = vld [vmem:[#allocation2 + $0x14] sm:$0x3]
    %v74 = vld [vmem:[#allocation2 + $0x16] sm:$0x3]
    %v75 = vunpack.c.0.s8 %v63
    %v76 = vunpack.c.0.s8 %v64
    %v77 = vunpack.c.0.s8 %v65
    %v78 = vunpack.c.0.s8 %v66
    %v79 = vunpack.c.0.s8 %v67
    %v80 = vunpack.c.0.s8 %v68
    %v81 = vunpack.c.0.s8 %v69
    %v82 = vunpack.c.0.s8 %v70
    %v83 = vunpack.c.0.s8 %v71
    %v84 = vunpack.c.0.s8 %v72
    %v85 = vunpack.c.0.s8 %v73
    %v86 = vunpack.c.0.s8 %v74
    %v87 = vand.u32 %v75, 255
    %v88 = vand.u32 %v76, 255
    %v89 = vand.u32 %v77, 255
    %v90 = vand.u32 %v78, 255
    %v91 = vand.u32 %v79, 255
    %v92 = vand.u32 %v80, 255
    %v93 = vand.u32 %v81, 255
    %v94 = vand.u32 %v82, 255
    %v95 = vand.u32 %v83, 255
    %v96 = vand.u32 %v84, 255
    %v97 = vand.u32 %v85, 255
    %v98 = vand.u32 %v86, 255
    %v99 = vcvt.s32.f32 %v87
    %v100 = vcvt.s32.f32 %v88
    %v101 = vcvt.s32.f32 %v89
    %v102 = vcvt.s32.f32 %v90
    %v103 = vcvt.s32.f32 %v91
    %v104 = vcvt.s32.f32 %v92
    %v105 = vcvt.s32.f32 %v93
    %v106 = vcvt.s32.f32 %v94
    %v107 = vcvt.s32.f32 %v95
    %v108 = vcvt.s32.f32 %v96
    %v109 = vcvt.s32.f32 %v97
    %v110 = vcvt.s32.f32 %v98
    %v111 = vpack.c.bf16 %v99, %v99
    %v112 = vpack.c.bf16 %v100, %v100
    %v113 = vpack.c.bf16 %v101, %v101
    %v114 = vpack.c.bf16 %v102, %v102
    %v115 = vpack.c.bf16 %v103, %v103
    %v116 = vpack.c.bf16 %v104, %v104
    %v117 = vpack.c.bf16 %v105, %v105
    %v118 = vpack.c.bf16 %v106, %v106
    %v119 = vpack.c.bf16 %v107, %v107
    %v120 = vpack.c.bf16 %v108, %v108
    %v121 = vpack.c.bf16 %v109, %v109
    %v122 = vpack.c.bf16 %v110, %v110
    %v123 = vld [vmem:[#allocation7] sm:$0xf]
    %v124 = vld [vmem:[#allocation7 + $0x4] sm:$0xf]
    %v137 = vunpack.c.l.b16 %v111
    %v138 = vunpack.c.l.b16 %v112
    %v139 = vunpack.c.l.b16 %v113
    %v140 = vunpack.c.l.b16 %v114
    %v141 = vunpack.c.l.b16 %v115
    %v142 = vunpack.c.l.b16 %v116
    %v143 = vunpack.c.l.b16 %v117
    %v144 = vunpack.c.l.b16 %v118
    %v145 = vunpack.c.l.b16 %v119
    %v146 = vunpack.c.l.b16 %v120
    %v147 = vunpack.c.l.b16 %v121
    %v148 = vunpack.c.l.b16 %v122
    %v149 = vpack.c.b16 %v138, %v137
    %v150 = vpack.c.b16 %v140, %v139
    %v151 = vpack.c.b16 %v142, %v141
    %v152 = vpack.c.b16 %v144, %v143
    %v153 = vpack.c.b16 %v146, %v145
    %v154 = vpack.c.b16 %v148, %v147
    %v157 = vunpack.c.l.b16 %v123
    %v158 = vunpack.c.l.b16 %v124
    %v159 = vpack.c.b16 %v158, %v157
    %vm161 = vcmask 130048
    %v163 = vsel %vm161, %v149, 0
    %v166 = vsel %vm161, %v150, 0
    %v169 = vsel %vm161, %v151, 0
    %v172 = vsel %vm161, %v152, 0
    %v175 = vsel %vm161, %v153, 0
    %v178 = vsel %vm161, %v154, 0
    %180 = vmatpush.bf16.msra.mxu0 0
    %181 = vmatpush.bf16.msra.mxu0 0
    %182 = vmatpush.bf16.msra.mxu0 0
    %183 = vmatpush.bf16.msra.mxu0 0
    %184 = vmatpush.bf16.msra.mxu0 0
    %185 = vmatpush.bf16.msra.mxu0 0
    %186 = vmatpush.bf16.msra.mxu0 0
    %187 = vmatpush.bf16.msra.mxu0 %v159
    %188 = vmatmul.bf16.gmra.mxu0 %v163
    %v189 = vpop.f32.mrf.mxu0
    %v190 = vadd.f32 0.0, %v189
    %v191 = vpop.f32.mrf.mxu0
    %v192 = vadd.f32 0.0, %v191
    %193 = vmatmul.bf16.gmra.mxu0 %v166
    %v194 = vpop.f32.mrf.mxu0
    %v195 = vadd.f32 0.0, %v194
    %v196 = vpop.f32.mrf.mxu0
    %v197 = vadd.f32 0.0, %v196
    %198 = vmatmul.bf16.gmra.mxu0 %v169
    %v199 = vpop.f32.mrf.mxu0
    %v200 = vadd.f32 0.0, %v199
    %v201 = vpop.f32.mrf.mxu0
    %v202 = vadd.f32 0.0, %v201
    %203 = vmatmul.bf16.gmra.mxu0 %v172
    %v204 = vpop.f32.mrf.mxu0
    %v205 = vadd.f32 0.0, %v204
    %v206 = vpop.f32.mrf.mxu0
    %v207 = vadd.f32 0.0, %v206
    %208 = vmatmul.bf16.gmra.mxu0 %v175
    %v209 = vpop.f32.mrf.mxu0
    %v210 = vadd.f32 0.0, %v209
    %v211 = vpop.f32.mrf.mxu0
    %v212 = vadd.f32 0.0, %v211
    %213 = vmatmul.bf16.gmra.mxu0 %v178
    %v214 = vpop.f32.mrf.mxu0
    %v215 = vadd.f32 0.0, %v214
    %v216 = vpop.f32.mrf.mxu0
    %v217 = vadd.f32 0.0, %v216
    %218 = vdwg.mxu0
    %v219 = vpack.c.bf16 %v190, %v190
    %v220 = vpack.c.bf16 %v192, %v192
    %v221 = vpack.c.bf16 %v195, %v195
    %v222 = vpack.c.bf16 %v197, %v197
    %v223 = vpack.c.bf16 %v200, %v200
    %v224 = vpack.c.bf16 %v202, %v202
    %v225 = vpack.c.bf16 %v205, %v205
    %v226 = vpack.c.bf16 %v207, %v207
    %v227 = vpack.c.bf16 %v210, %v210
    %v228 = vpack.c.bf16 %v212, %v212
    %v229 = vpack.c.bf16 %v215, %v215
    %v230 = vpack.c.bf16 %v217, %v217
    %v231 = vld [vmem:[#allocation5] sm:$0xf]
    %v232 = vld [vmem:[#allocation5 + $0x4] sm:$0xf]
    %v235 = vunpack.c.l.b16 %v231
    %v236 = vunpack.c.l.b16 %v232
    %v237 = vpack.c.b16 %v236, %v235
    %v240 = vunpack.c.l.b16 %v219
    %v241 = vunpack.c.l.b16 %v220
    %v242 = vpack.c.b16 %v241, %v240
    %v245 = vsel %vm161, %v237, 0
    %247 = vmatpush.bf16.msra.mxu0 0
    %248 = vmatpush.bf16.msra.mxu0 0
    %249 = vmatpush.bf16.msra.mxu0 0
    %250 = vmatpush.bf16.msra.mxu0 0
    %251 = vmatpush.bf16.msra.mxu0 0
    %252 = vmatpush.bf16.msra.mxu0 0
    %253 = vmatpush.bf16.msra.mxu0 0
    %254 = vmatpush.bf16.msra.mxu0 %v242
    %255 = vmatmul.bf16.gmra.mxu0 %v245
    %v256 = vpop.f32.mrf.mxu0
    %v257 = vadd.f32 -1.7922626, %v256
    %v258 = vpop.f32.mrf.mxu0
    %v259 = vadd.f32 -1.7922626, %v258
    %260 = vdwg.mxu0
    %261 = vst.msk [vmem:[#allocation8] sm:$0xff] %vm161, %v257
    %262 = vst.msk [vmem:[#allocation8 + $0x8] sm:$0xff] %vm161, %v259
    %s263 = scalar_lea.vmem [#allocation5], 8
    %v264 = vld [vmem:[%s263] sm:$0xf]
    %v265 = vld [vmem:[%s263 + $0x4] sm:$0xf]
    %v268 = vunpack.c.l.b16 %v264
    %v269 = vunpack.c.l.b16 %v265
    %v270 = vpack.c.b16 %v269, %v268
    %v273 = vunpack.c.l.b16 %v221
    %v274 = vunpack.c.l.b16 %v222
    %v275 = vpack.c.b16 %v274, %v273
    %v278 = vsel %vm161, %v270, 0
    %280 = vmatpush.bf16.msra.mxu0 0
    %281 = vmatpush.bf16.msra.mxu0 0
    %282 = vmatpush.bf16.msra.mxu0 0
    %283 = vmatpush.bf16.msra.mxu0 0
    %284 = vmatpush.bf16.msra.mxu0 0
    %285 = vmatpush.bf16.msra.mxu0 0
    %286 = vmatpush.bf16.msra.mxu0 0
    %287 = vmatpush.bf16.msra.mxu0 %v275
    %288 = vmatmul.bf16.gmra.mxu0 %v278
    %v289 = vpop.f32.mrf.mxu0
    %v290 = vadd.f32 -1.7520971, %v289
    %v291 = vpop.f32.mrf.mxu0
    %v292 = vadd.f32 -1.7520971, %v291
    %293 = vdwg.mxu0
    %s294 = scalar_lea.vmem [#allocation8], 16
    %295 = vst.msk [vmem:[%s294] sm:$0xff] %vm161, %v290
    %296 = vst.msk [vmem:[%s294 + $0x8] sm:$0xff] %vm161, %v292
    %s297 = scalar_lea.vmem [#allocation5], 16
    %v298 = vld [vmem:[%s297] sm:$0xf]
    %v299 = vld [vmem:[%s297 + $0x4] sm:$0xf]
    %v302 = vunpack.c.l.b16 %v298
    %v303 = vunpack.c.l.b16 %v299
    %v304 = vpack.c.b16 %v303, %v302
    %v307 = vunpack.c.l.b16 %v223
    %v308 = vunpack.c.l.b16 %v224
    %v309 = vpack.c.b16 %v308, %v307
    %v312 = vsel %vm161, %v304, 0
    %314 = vmatpush.bf16.msra.mxu0 0
    %315 = vmatpush.bf16.msra.mxu0 0
    %316 = vmatpush.bf16.msra.mxu0 0
    %317 = vmatpush.bf16.msra.mxu0 0
    %318 = vmatpush.bf16.msra.mxu0 0
    %319 = vmatpush.bf16.msra.mxu0 0
    %320 = vmatpush.bf16.msra.mxu0 0
    %321 = vmatpush.bf16.msra.mxu0 %v309
    %322 = vmatmul.bf16.gmra.mxu0 %v312
    %v323 = vpop.f32.mrf.mxu0
    %v324 = vadd.f32 -1.4802197, %v323
    %v325 = vpop.f32.mrf.mxu0
    %v326 = vadd.f32 -1.4802197, %v325
    %327 = vdwg.mxu0
    %s328 = scalar_lea.vmem [#allocation8], 32
    %329 = vst.msk [vmem:[%s328] sm:$0xff] %vm161, %v324
    %330 = vst.msk [vmem:[%s328 + $0x8] sm:$0xff] %vm161, %v326
    %v331 = vld [vmem:[#allocation5] sm:$0xf]
    %v332 = vld [vmem:[#allocation5 + $0x4] sm:$0xf]
    %v335 = vunpack.c.l.b16 %v331
    %v336 = vunpack.c.l.b16 %v332
    %v337 = vpack.c.b16 %v336, %v335
    %v340 = vunpack.c.l.b16 %v225
    %v341 = vunpack.c.l.b16 %v226
    %v342 = vpack.c.b16 %v341, %v340
    %v345 = vsel %vm161, %v337, 0
    %347 = vmatpush.bf16.msra.mxu0 0
    %348 = vmatpush.bf16.msra.mxu0 0
    %349 = vmatpush.bf16.msra.mxu0 0
    %350 = vmatpush.bf16.msra.mxu0 0
    %351 = vmatpush.bf16.msra.mxu0 0
    %352 = vmatpush.bf16.msra.mxu0 0
    %353 = vmatpush.bf16.msra.mxu0 0
    %354 = vmatpush.bf16.msra.mxu0 %v342
    %355 = vmatmul.bf16.gmra.mxu0 %v345
    %v356 = vpop.f32.mrf.mxu0
    %v357 = vadd.f32 -1.7922626, %v356
    %v358 = vpop.f32.mrf.mxu0
    %v359 = vadd.f32 -1.7922626, %v358
    %360 = vdwg.mxu0
    %s361 = scalar_lea.vmem [#allocation8], 48
    %362 = vst.msk [vmem:[%s361] sm:$0xff] %vm161, %v357
    %363 = vst.msk [vmem:[%s361 + $0x8] sm:$0xff] %vm161, %v359
    %v364 = vld [vmem:[%s263] sm:$0xf]
    %v365 = vld [vmem:[%s263 + $0x4] sm:$0xf]
    %v368 = vunpack.c.l.b16 %v364
    %v369 = vunpack.c.l.b16 %v365
    %v370 = vpack.c.b16 %v369, %v368
    %v373 = vunpack.c.l.b16 %v227
    %v374 = vunpack.c.l.b16 %v228
    %v375 = vpack.c.b16 %v374, %v373
    %v378 = vsel %vm161, %v370, 0
    %380 = vmatpush.bf16.msra.mxu0 0
    %381 = vmatpush.bf16.msra.mxu0 0
    %382 = vmatpush.bf16.msra.mxu0 0
    %383 = vmatpush.bf16.msra.mxu0 0
    %384 = vmatpush.bf16.msra.mxu0 0
    %385 = vmatpush.bf16.msra.mxu0 0
    %386 = vmatpush.bf16.msra.mxu0 0
    %387 = vmatpush.bf16.msra.mxu0 %v375
    %388 = vmatmul.bf16.gmra.mxu0 %v378
    %v389 = vpop.f32.mrf.mxu0
    %v390 = vadd.f32 -1.7520971, %v389
    %v391 = vpop.f32.mrf.mxu0
    %v392 = vadd.f32 -1.7520971, %v391
    %393 = vdwg.mxu0
    %s394 = scalar_lea.vmem [#allocation8], 64
    %395 = vst.msk [vmem:[%s394] sm:$0xff] %vm161, %v390
    %396 = vst.msk [vmem:[%s394 + $0x8] sm:$0xff] %vm161, %v392
    %v397 = vld [vmem:[%s297] sm:$0xf]
    %v398 = vld [vmem:[%s297 + $0x4] sm:$0xf]
    %v401 = vunpack.c.l.b16 %v397
    %v402 = vunpack.c.l.b16 %v398
    %v403 = vpack.c.b16 %v402, %v401
    %v406 = vunpack.c.l.b16 %v229
    %v407 = vunpack.c.l.b16 %v230
    %v408 = vpack.c.b16 %v407, %v406
    %v411 = vsel %vm161, %v403, 0
    %413 = vmatpush.bf16.msra.mxu0 0
    %414 = vmatpush.bf16.msra.mxu0 0
    %415 = vmatpush.bf16.msra.mxu0 0
    %416 = vmatpush.bf16.msra.mxu0 0
    %417 = vmatpush.bf16.msra.mxu0 0
    %418 = vmatpush.bf16.msra.mxu0 0
    %419 = vmatpush.bf16.msra.mxu0 0
    %420 = vmatpush.bf16.msra.mxu0 %v408
    %421 = vmatmul.bf16.gmra.mxu0 %v411
    %v422 = vpop.f32.mrf.mxu0
    %v423 = vadd.f32 -1.4802197, %v422
    %v424 = vpop.f32.mrf.mxu0
    %v425 = vadd.f32 -1.4802197, %v424
    %426 = vdwg.mxu0
    %s427 = scalar_lea.vmem [#allocation8], 80
    %428 = vst.msk [vmem:[%s427] sm:$0xff] %vm161, %v423
    %429 = vst.msk [vmem:[%s427 + $0x8] sm:$0xff] %vm161, %v425
    // Predicated region
    $region26: #{tpu_custom_call.1} parent=1 // pred_check
      _
    $region27: #{tpu_custom_call.1} parent=1 // pred_check_branch
      %431 = sbr.rel (0) target = $region29
    $region28: #{tpu_custom_call.1} parent=1 // pred_region
      %433 = vsyncadd [#allocation4], 0
      %s434 = sshll.u32 [#allocation8], 4
      %s435 = int_to_ptr.vmem [resolvable:$true] %s434
      %s436 = sshll.u32 %s3, 4
      %s437 = int_to_ptr.hbm [resolvable:$true] %s436
      %442 = dma.vmem_to_hbm [thread:$0]  %s435, 1536, %s437, [#allocation4], 128, 128, 8
    $region29: #{tpu_custom_call.1} parent=1 // pred_fallthru
      _
    // Predicated region
    $region30: #{tpu_custom_call.1} parent=1 // pred_check
      _
    $region31: #{tpu_custom_call.1} parent=1 // pred_check_branch
      %444 = sbr.rel (0) target = $region33
    $region32: #{tpu_custom_call.1} parent=1 // pred_region
      %446 = dma.done [#allocation4], 1536
    $region33: #{tpu_custom_call.1} parent=1 // pred_fallthru
      _
    %447 = vsyncpa [#allocation3], 1
    %448 = vsyncpa [#allocation6], 1
    %449 = vsyncpa [#allocation4], 1

</llo_original>
